<compile_context>
chip_gen: v7x
topology: tpu7x:2x2x1
jax: 0.10.0
libtpu: 0.0.40
codegen_flags: <defaults>
</compile_context>

<pallas_src>
import jax
import jax.numpy as jnp
from jax import lax
from jax.experimental import pallas as pl
from jax.experimental.pallas import tpu as pltpu


def _cnn_text_kernel(ids_ref, table_ref, wcat_ref, b_ref, mask_ref,
                     fcw_ref, fcb_ref, out_ref, x_ref):
    """One batch tile of the CNN_Text forward pass.

    ids_ref  : [B_pad*S]           token ids (SMEM, scalar-prefetched)
    table_ref: [V_pad, E_pad]      embedding table (VMEM resident, compute dtype)
    wcat_ref : [max_fs*E_pad, C]   im2col-fused conv weights (C = padded 3*F)
    b_ref    : [1, C]              fused conv bias (f32)
    mask_ref : [S, C]              validity mask (f32)
    fcw_ref  : [C, OUT]            lane-padded fc weights (f32)
    fcb_ref  : [1, OUT]            lane-padded fc bias (f32)
    out_ref  : [block_b, OUT]      lane-padded logits (f32)
    x_ref    : [block_b*S, E_pad]  f32 gather scratch
    """
    block_b, _ = out_ref.shape
    S, C = mask_ref.shape
    E_pad = table_ref.shape[1]
    max_fs = wcat_ref.shape[0] // E_pad
    T = block_b * S

    base = pl.program_id(0) * T

    # ---- in-kernel embedding gather: ids (SMEM) -> table rows (VMEM) ----
    def gather_row(t, carry):
        tok = ids_ref[base + t]
        x_ref[pl.ds(t, 1), :] = table_ref[pl.ds(tok, 1), :].astype(jnp.float32)
        return carry

    lax.fori_loop(0, T, gather_row, 0)

    x = x_ref[...]                                               # [T, E_pad] f32

    # ---- im2col: one fat MXU matmul over all taps and all filter banks ----
    # roll by T-k == roll by -k: row t picks up token t+k; wrapped / cross-
    # sample rows only reach time positions the mask zeroes below.
    shifted = [x] + [pltpu.roll(x, shift=T - k, axis=0) for k in range(1, max_fs)]
    x_cat = jnp.concatenate(shifted, axis=1).astype(wcat_ref.dtype)  # [T, max_fs*E_pad]
    conv = jnp.dot(x_cat, wcat_ref[...],
                   preferred_element_type=jnp.float32)               # [T, C] f32

    conv = conv.reshape(block_b, S, C) + b_ref[...]                  # + bias
    conv = jnp.maximum(conv, 0.0) * mask_ref[...]                    # ReLU + mask
    pooled = jnp.max(conv, axis=1)                                   # [block_b, C] f32

    # FC in f32 (keeps the lane-dense padded OUT store, avoids bf16 rounding
    # of the pooled activations).
    out_ref[...] = (jnp.dot(pooled, fcw_ref[...],
                            preferred_element_type=jnp.float32) + fcb_ref[...])


def _round_up(x, m):
    return ((x + m - 1) // m) * m


def init_params(key, vocab_size, embedding_dim, n_filters, filter_sizes,
                output_dim, pad_idx):
    keys = jax.random.split(key, 2 + 2 * len(filter_sizes) + 2)
    emb = 0.1 * jax.random.normal(keys[0], (vocab_size, embedding_dim), jnp.float32)
    emb = emb.at[pad_idx].set(0.0)                        # padding_idx row is zero
    conv_w, conv_b = [], []
    for i, fs in enumerate(filter_sizes):
        conv_w.append(0.1 * jax.random.normal(
            keys[2 + 2 * i], (n_filters, 1, fs, embedding_dim), jnp.float32))
        conv_b.append(0.1 * jax.random.normal(
            keys[3 + 2 * i], (n_filters,), jnp.float32))
    fc_w = 0.1 * jax.random.normal(
        keys[-2], (output_dim, len(filter_sizes) * n_filters), jnp.float32)
    fc_b = 0.1 * jax.random.normal(keys[-1], (output_dim,), jnp.float32)
    return dict(embedding=emb, conv_w=conv_w, conv_b=conv_b, fc_w=fc_w, fc_b=fc_b)


def cnn_text_forward(text, params, filter_sizes, compute_dtype=jnp.bfloat16):
    """text: int32 [B, S] token ids -> logits [B, output_dim] (eval mode).

    compute_dtype controls the MXU input dtype of the embedding table /
    conv weights (bf16 default on all generations; accumulation and the FC
    matmul stay f32).
    """
    filter_sizes = tuple(filter_sizes)
    B, S = text.shape
    V, E = params["embedding"].shape
    F = params["conv_w"][0].shape[0]
    n_fs = len(filter_sizes)
    max_fs = max(filter_sizes)
    output_dim = params["fc_w"].shape[0]

    if S < max_fs:
        raise ValueError(f"sequence length {S} < largest filter size {max_fs}")

    E_pad = _round_up(E, 128)             # lane-dense matmul contraction chunks
    V_pad = _round_up(V, 8)               # sublane-aligned table rows
    C = _round_up(n_fs * F, 128)          # lane-padded fused conv channels
    OUT = _round_up(output_dim, 128)      # lane-padded logits

    # --- batch tile from a VMEM budget (sized for v7x 32 MiB scoped VMEM) ---
    act_bytes = jnp.dtype(compute_dtype).itemsize
    per_row = S * (E_pad * 4 + max_fs * E_pad * act_bytes + 2 * C * 4)
    budget = 6 * 1024 * 1024
    block_b = (budget // per_row) // 8 * 8
    block_b = max(8, min(block_b, 256))
    # keep >= 2 grid steps when the batch is big enough (v7x has 2 TensorCores)
    block_b = min(block_b, max(8, _round_up(-(-B // 2), 8)))
    B_pad = _round_up(B, block_b)

    # --- lane/sublane-padded embedding table (compute dtype) ---
    table = jnp.zeros((V_pad, E_pad), compute_dtype)
    table = table.at[:V, :E].set(params["embedding"].astype(compute_dtype))

    # --- im2col-fused conv weights [max_fs*E_pad, C] + fused bias ---
    w_cat = jnp.zeros((max_fs * E_pad, C), compute_dtype)
    b_all = jnp.zeros((1, C), jnp.float32)
    for i, (W, b, fs) in enumerate(zip(params["conv_w"], params["conv_b"],
                                       filter_sizes)):
        w_t = jnp.transpose(W[:, 0, :, :], (1, 2, 0)).astype(compute_dtype)  # [fs,E,F]
        for k in range(fs):
            w_cat = w_cat.at[k * E_pad:k * E_pad + E, i * F:(i + 1) * F].set(w_t[k])
        b_all = b_all.at[0, i * F:(i + 1) * F].set(b)

    # --- validity mask: filter of size fs only pools positions t <= S - fs ---
    valid_len = []
    for fs in filter_sizes:
        valid_len += [S - fs + 1] * F
    valid_len += [0] * (C - len(valid_len))               # padded lanes: never valid
    valid_len = jnp.asarray(valid_len, jnp.int32)
    mask = (jnp.arange(S, dtype=jnp.int32)[:, None] < valid_len[None, :]
            ).astype(jnp.float32)                         # [S, C]

    # --- lane-padded FC weights/bias (kept f32: FC runs in f32) ---
    fc_w = jnp.zeros((C, OUT), jnp.float32)
    fc_w = fc_w.at[:n_fs * F, :output_dim].set(params["fc_w"].T)
    fc_b = jnp.zeros((1, OUT), jnp.float32)
    fc_b = fc_b.at[0, :output_dim].set(params["fc_b"])

    # --- token ids: pad batch, flatten, scalar-prefetch into SMEM ---
    ids = jnp.zeros((B_pad, S), jnp.int32).at[:B].set(text.astype(jnp.int32))
    ids_flat = ids.reshape(-1)

    grid_spec = pltpu.PrefetchScalarGridSpec(
        num_scalar_prefetch=1,
        grid=(B_pad // block_b,),
        in_specs=[
            pl.BlockSpec((V_pad, E_pad), lambda i, ids: (0, 0)),        # table (resident)
            pl.BlockSpec((max_fs * E_pad, C), lambda i, ids: (0, 0)),   # conv weights
            pl.BlockSpec((1, C), lambda i, ids: (0, 0)),                # conv bias
            pl.BlockSpec((S, C), lambda i, ids: (0, 0)),                # validity mask
            pl.BlockSpec((C, OUT), lambda i, ids: (0, 0)),              # fc weights
            pl.BlockSpec((1, OUT), lambda i, ids: (0, 0)),              # fc bias
        ],
        out_specs=pl.BlockSpec((block_b, OUT), lambda i, ids: (i, 0)),
        scratch_shapes=[pltpu.VMEM((block_b * S, E_pad), jnp.float32)],
    )

    out = pl.pallas_call(
        _cnn_text_kernel,
        out_shape=jax.ShapeDtypeStruct((B_pad, OUT), jnp.float32),
        grid_spec=grid_spec,
        compiler_params=pltpu.CompilerParams(
            dimension_semantics=("parallel",),
            vmem_limit_bytes=32 * 1024 * 1024),
    )(ids_flat, table, w_cat, b_all, mask, fc_w, fc_b)

    return out[:B, :output_dim]


def cnn_text_reference(text, params, filter_sizes):
    """Pure-JAX reference mirroring the PyTorch forward (eval mode)."""
    emb = jnp.take(params["embedding"], text, axis=0)     # [B, S, E]
    pooled = []
    for W, b, fs in zip(params["conv_w"], params["conv_b"], filter_sizes):
        S = emb.shape[1]
        L = S - fs + 1
        # conv[b, f, t] = sum_{k,e} emb[b, t+k, e] * W[f, 0, k, e] + b[f]
        taps = jnp.stack([emb[:, k:k + L, :] for k in range(fs)], axis=2)  # [B,L,fs,E]
        conv = jnp.einsum("blke,fke->blf", taps, W[:, 0]) + b
        conv = jax.nn.relu(conv)
        pooled.append(jnp.max(conv, axis=1))               # [B, F]
    cat = jnp.concatenate(pooled, axis=1)
    return cat @ params["fc_w"].T + params["fc_b"]


if __name__ == "__main__":
    vocab_size, embedding_dim = 50, 32
    n_filters, filter_sizes = 8, (3, 4, 5)
    output_dim, pad_idx = 2, 0
    batch, seq_len = 2, 16

    key = jax.random.PRNGKey(0)
    k_param, k_text = jax.random.split(key)
    params = init_params(k_param, vocab_size, embedding_dim, n_filters,
                         filter_sizes, output_dim, pad_idx)
    text = jax.random.randint(k_text, (batch, seq_len), 0, vocab_size, jnp.int32)

    ref = jax.block_until_ready(cnn_text_reference(text, params, filter_sizes))

    # f32 compute path: tight check against the pure-JAX reference.
    out_f32 = jax.block_until_ready(
        cnn_text_forward(text, params, filter_sizes, compute_dtype=jnp.float32))
    assert out_f32.shape == (batch, output_dim)
    assert jnp.allclose(out_f32, ref, atol=1e-4, rtol=1e-4), (out_f32, ref)

    # Default bf16 compute path: loosened tolerance (bf16 rounding of the
    # embedding table / conv weights; accumulation and FC remain f32).
    out_bf16 = jax.block_until_ready(cnn_text_forward(text, params, filter_sizes))
    assert out_bf16.shape == (batch, output_dim)
    assert jnp.allclose(out_bf16, ref, atol=5e-2, rtol=5e-2), (out_bf16, ref)

    print("KERNEL_OK")
</pallas_src>

<mosaic_0001>
module attributes {stable_mosaic.version = 11 : i64} {
  func.func @_cnn_text_kernel(%arg0: i32, %arg1: memref<128xi32, #tpu.memory_space<smem>>, %arg2: memref<56x128xf32, #tpu.memory_space<vmem>>, %arg3: memref<640x128xf32, #tpu.memory_space<vmem>>, %arg4: memref<1x128xf32, #tpu.memory_space<vmem>>, %arg5: memref<16x128xf32, #tpu.memory_space<vmem>>, %arg6: memref<128x128xf32, #tpu.memory_space<vmem>>, %arg7: memref<1x128xf32, #tpu.memory_space<vmem>>, %arg8: memref<8x128xf32, #tpu.memory_space<vmem>>, %arg9: memref<128x128xf32, #tpu.memory_space<vmem>>) attributes {dimension_semantics = [#tpu.dimension_semantics<parallel>], iteration_bounds = array<i64: 1>, scalar_prefetch = 1 : i64, scratch_operands = 1 : i64, tpu.core_type = #tpu.core_type<tc>, window_params = [{pipeline_mode = #tpu.pipeline_mode<synchronous>, transform_indices = @transform_0, window_bounds = array<i64: 56, 128>}, {pipeline_mode = #tpu.pipeline_mode<synchronous>, transform_indices = @transform_1, window_bounds = array<i64: 640, 128>}, {pipeline_mode = #tpu.pipeline_mode<synchronous>, transform_indices = @transform_2, window_bounds = array<i64: 1, 128>}, {pipeline_mode = #tpu.pipeline_mode<synchronous>, transform_indices = @transform_3, window_bounds = array<i64: 16, 128>}, {pipeline_mode = #tpu.pipeline_mode<synchronous>, transform_indices = @transform_4, window_bounds = array<i64: 128, 128>}, {pipeline_mode = #tpu.pipeline_mode<synchronous>, transform_indices = @transform_5, window_bounds = array<i64: 1, 128>}, {transform_indices = @transform_6, window_bounds = array<i64: 8, 128>}]} {
    %c128_i32 = arith.constant 128 : i32
    %0 = arith.muli %arg0, %c128_i32 : i32
    %c0_i32 = arith.constant 0 : i32
    %c128_i32_0 = arith.constant 128 : i32
    %1 = arith.addi %c0_i32, %c128_i32_0 : i32
    %c1_i32 = arith.constant 1 : i32
    scf.for %arg10 = %c0_i32 to %1 step %c1_i32  : i32 {
      %28 = arith.addi %0, %arg10 : i32
      %29 = arith.index_cast %28 : i32 to index
      %30 = memref.load %arg1[%29] : memref<128xi32, #tpu.memory_space<smem>>
      %31 = arith.index_cast %30 : i32 to index
      %c0_18 = arith.constant 0 : index
      %32 = vector.load %arg2[%31, %c0_18] : memref<56x128xf32, #tpu.memory_space<vmem>>, vector<1x128xf32>
      %33 = arith.index_cast %arg10 : i32 to index
      %c0_19 = arith.constant 0 : index
      %34 = vector.load %arg9[%33, %c0_19] : memref<128x128xf32, #tpu.memory_space<vmem>>, vector<1x128xf32>
      tpu.vector_store %arg9[%33, %c0_19], %32 {strides = array<i32>} : memref<128x128xf32, #tpu.memory_space<vmem>>, vector<1x128xf32>,
    }
    %c128_i32_1 = arith.constant 128 : i32
    %c0 = arith.constant 0 : index
    %c0_2 = arith.constant 0 : index
    %2 = vector.load %arg9[%c0, %c0_2] : memref<128x128xf32, #tpu.memory_space<vmem>>, vector<128x128xf32>
    %c127_i32 = arith.constant 127 : i32
    %3 = tpu.dynamic_rotate %2 by %c127_i32 dim 0 : vector<128x128xf32>, i32 -> vector<128x128xf32>
    %c126_i32 = arith.constant 126 : i32
    %4 = tpu.dynamic_rotate %2 by %c126_i32 dim 0 : vector<128x128xf32>, i32 -> vector<128x128xf32>
    %c125_i32 = arith.constant 125 : i32
    %5 = tpu.dynamic_rotate %2 by %c125_i32 dim 0 : vector<128x128xf32>, i32 -> vector<128x128xf32>
    %c124_i32 = arith.constant 124 : i32
    %6 = tpu.dynamic_rotate %2 by %c124_i32 dim 0 : vector<128x128xf32>, i32 -> vector<128x128xf32>
    %7 = tpu.concatenate %2, %3, %4, %5, %6 in 1 : vector<128x128xf32>, vector<128x128xf32>, vector<128x128xf32>, vector<128x128xf32>, vector<128x128xf32> -> vector<128x640xf32>
    %c0_3 = arith.constant 0 : index
    %c0_4 = arith.constant 0 : index
    %8 = vector.load %arg3[%c0_3, %c0_4] : memref<640x128xf32, #tpu.memory_space<vmem>>, vector<640x128xf32>
    %cst = arith.constant dense<0.000000e+00> : vector<128x128xf32>
    %9 = tpu.matmul %7, %8, %cst {dimension_numbers = #tpu.dot_dimension_numbers<[1], [0], [0], [1], [0, 0, 1, 1], [], []>} : vector<128x640xf32>, vector<640x128xf32>, vector<128x128xf32> -> vector<128x128xf32>
    %10 = vector.shape_cast %9 : vector<128x128xf32> to vector<8x16x128xf32>
    %c0_5 = arith.constant 0 : index
    %c0_6 = arith.constant 0 : index
    %11 = vector.load %arg4[%c0_5, %c0_6] : memref<1x128xf32, #tpu.memory_space<vmem>>, vector<1x128xf32>
    %12 = vector.shape_cast %11 : vector<1x128xf32> to vector<1x1x128xf32>
    %13 = vector.broadcast %12 : vector<1x1x128xf32> to vector<8x16x128xf32>
    %14 = arith.addf %10, %13 : vector<8x16x128xf32>
    %cst_7 = arith.constant 0.000000e+00 : f32
    %15 = vector.broadcast %cst_7 : f32 to vector<8x16x128xf32>
    %16 = arith.maximumf %14, %15 : vector<8x16x128xf32>
    %c0_8 = arith.constant 0 : index
    %c0_9 = arith.constant 0 : index
    %17 = vector.load %arg5[%c0_8, %c0_9] : memref<16x128xf32, #tpu.memory_space<vmem>>, vector<16x128xf32>
    %18 = vector.shape_cast %17 : vector<16x128xf32> to vector<1x16x128xf32>
    %19 = vector.broadcast %18 : vector<1x16x128xf32> to vector<8x16x128xf32>
    %20 = arith.mulf %16, %19 : vector<8x16x128xf32>
    %cst_10 = arith.constant dense<0xFF800000> : vector<8x128xf32>
    %21 = vector.multi_reduction <maximumf>, %20, %cst_10 [1] : vector<8x16x128xf32> to vector<8x128xf32>
    %c0_11 = arith.constant 0 : index
    %c0_12 = arith.constant 0 : index
    %22 = vector.load %arg6[%c0_11, %c0_12] : memref<128x128xf32, #tpu.memory_space<vmem>>, vector<128x128xf32>
    %cst_13 = arith.constant dense<0.000000e+00> : vector<8x128xf32>
    %23 = tpu.matmul %21, %22, %cst_13 {dimension_numbers = #tpu.dot_dimension_numbers<[1], [0], [0], [1], [0, 0, 1, 1], [], []>} : vector<8x128xf32>, vector<128x128xf32>, vector<8x128xf32> -> vector<8x128xf32>
    %c0_14 = arith.constant 0 : index
    %c0_15 = arith.constant 0 : index
    %24 = vector.load %arg7[%c0_14, %c0_15] : memref<1x128xf32, #tpu.memory_space<vmem>>, vector<1x128xf32>
    %25 = vector.broadcast %24 : vector<1x128xf32> to vector<8x128xf32>
    %26 = arith.addf %23, %25 : vector<8x128xf32>
    %c0_16 = arith.constant 0 : index
    %c0_17 = arith.constant 0 : index
    %27 = vector.load %arg8[%c0_16, %c0_17] : memref<8x128xf32, #tpu.memory_space<vmem>>, vector<8x128xf32>
    tpu.vector_store %arg8[%c0_16, %c0_17], %26 {strides = array<i32>} : memref<8x128xf32, #tpu.memory_space<vmem>>, vector<8x128xf32>,
    return
  }
  func.func @transform_0(%arg0: i32, %arg1: memref<128xi32, #tpu.memory_space<smem>>) -> (i32, i32) {
    %c0_i32 = arith.constant 0 : i32
    %c0_i32_0 = arith.constant 0 : i32
    %c0_i32_1 = arith.constant 0 : i32
    return %c0_i32, %c0_i32_0 : i32, i32
  }
  func.func @transform_1(%arg0: i32, %arg1: memref<128xi32, #tpu.memory_space<smem>>) -> (i32, i32) {
    %c0_i32 = arith.constant 0 : i32
    %c0_i32_0 = arith.constant 0 : i32
    %c0_i32_1 = arith.constant 0 : i32
    return %c0_i32, %c0_i32_0 : i32, i32
  }
  func.func @transform_2(%arg0: i32, %arg1: memref<128xi32, #tpu.memory_space<smem>>) -> (i32, i32) {
    %c0_i32 = arith.constant 0 : i32
    %c0_i32_0 = arith.constant 0 : i32
    %c0_i32_1 = arith.constant 0 : i32
    return %c0_i32, %c0_i32_0 : i32, i32
  }
  func.func @transform_3(%arg0: i32, %arg1: memref<128xi32, #tpu.memory_space<smem>>) -> (i32, i32) {
    %c0_i32 = arith.constant 0 : i32
    %c0_i32_0 = arith.constant 0 : i32
    %c0_i32_1 = arith.constant 0 : i32
    return %c0_i32, %c0_i32_0 : i32, i32
  }
  func.func @transform_4(%arg0: i32, %arg1: memref<128xi32, #tpu.memory_space<smem>>) -> (i32, i32) {
    %c0_i32 = arith.constant 0 : i32
    %c0_i32_0 = arith.constant 0 : i32
    %c0_i32_1 = arith.constant 0 : i32
    return %c0_i32, %c0_i32_0 : i32, i32
  }
  func.func @transform_5(%arg0: i32, %arg1: memref<128xi32, #tpu.memory_space<smem>>) -> (i32, i32) {
    %c0_i32 = arith.constant 0 : i32
    %c0_i32_0 = arith.constant 0 : i32
    %c0_i32_1 = arith.constant 0 : i32
    return %c0_i32, %c0_i32_0 : i32, i32
  }
  func.func @transform_6(%arg0: i32, %arg1: memref<128xi32, #tpu.memory_space<smem>>) -> (i32, i32) {
    %c0_i32 = arith.constant 0 : i32
    %c0_i32_0 = arith.constant 0 : i32
    return %arg0, %c0_i32 : i32, i32
  }
}

</mosaic_0001>

<llo_original>
// kernel: tpu_custom_call.1
$region0: #{tpu_custom_call.1}
  #allocation0 [shape = 'u32[]', space=smem, size = 0x4, offset = 0x4, fixed_abs, tag = 'smem constant byte address 0x4 - core index']
  #allocation1 [shape = 'u32[144,128]{1,0:T(1,128)}', space=vmem, size = 0x12000, scoped, tag = 'internal scratch']
  #allocation2 [shape = 'f32[128,128]{1,0:T(8,128)}', space=vmem, size = 0x10000, scoped, tag = 'scratch operand']
  #allocation3 [shape = 's32[1]{0}', space=sflag, size = 0x4, scoped, tag = 'scoped memory for tpu_custom_call.1']
  #allocation4 [shape = 'u8[512]{0}', space=smem, size = 0x200, scoped, tag = 'prefetched SMEM operand 0']
  %s0 = inlined_call_operand.hbm [shape: s32[128], index: 0, kind: input, shape index: {}]
  %s1 = inlined_call_operand.hbm [shape: f32[56,128], index: 1, kind: input, shape index: {}]
  %s2 = inlined_call_operand.hbm [shape: f32[640,128], index: 2, kind: input, shape index: {}]
  %s3 = inlined_call_operand.vmem [shape: f32[1,128], index: 3, kind: input, shape index: {}]
  %s4 = inlined_call_operand.hbm [shape: f32[16,128], index: 4, kind: input, shape index: {}]
  %s5 = inlined_call_operand.hbm [shape: f32[128,128], index: 5, kind: input, shape index: {}]
  %s6 = inlined_call_operand.vmem [shape: f32[1,128], index: 6, kind: input, shape index: {}]
  %s7 = inlined_call_operand.hbm [shape: f32[8,128], index: 7, kind: output, shape index: {}]
  %s8 = sld [smem:[#allocation0]]
  $region57: #{tpu_custom_call.1} parent=0
    _
  %s10 = ssub.s32 1, %s8
  %s11 = scalar_select 0, %s10, %s8
  %13 = dma.hbm_to_smem %s0, 16, [#allocation4], [#allocation3]
  %14 = dma.done [#allocation3], 16
  %15 = sfence
  $region1: #{tpu_custom_call.1} parent=0
    #allocation5 [shape = 'u8[28672]{0}', space=vmem, size = 0x7000, scoped, tag = 'input window, operand 1, single buffered']
    #allocation6 [shape = 's32[1]{0}', space=sflag, size = 0x4, scoped, tag = 'scoped memory for tpu_custom_call.1']
    #allocation7 [shape = 's32[1]{0}', space=sflag, size = 0x4, scoped, tag = 'scoped memory for tpu_custom_call.1']
    #allocation8 [shape = 'u8[327680]{0}', space=vmem, size = 0x50000, scoped, tag = 'input window, operand 2, single buffered']
    #allocation9 [shape = 's32[1]{0}', space=sflag, size = 0x4, scoped, tag = 'scoped memory for tpu_custom_call.1']
    #allocation10 [shape = 'u8[8192]{0}', space=vmem, size = 0x2000, scoped, tag = 'input window, operand 4, single buffered']
    #allocation11 [shape = 'u8[65536]{0}', space=vmem, size = 0x10000, scoped, tag = 'input window, operand 5, single buffered']
    #allocation12 [shape = 's32[1]{0}', space=sflag, size = 0x4, scoped, tag = 'scoped memory for tpu_custom_call.1']
    #allocation13 [shape = 'u8[4096]{0}', space=vmem, size = 0x1000, scoped, tag = 'output window, operand 0, single buffered']
    %16 = vsyncpa [#allocation6], 0
    %17 = vsyncpa [#allocation9], 0
    %18 = vsyncpa [#allocation12], 0
    %19 = vsyncpa [#allocation7], 0
    // Predicated region
    $region2: #{tpu_custom_call.1} parent=1 // pred_check
      _
    $region3: #{tpu_custom_call.1} parent=1 // pred_check_branch
      %21 = sbr.rel (0) target = $region5
    $region4: #{tpu_custom_call.1} parent=1 // pred_region
      %s23 = ssub.s32 896, 896
      %24 = vsyncadd [#allocation6], %s23
      %s25 = sshll.u32 [#allocation5], 4
      %s26 = int_to_ptr.vmem [resolvable:$true] %s25
      %31 = dma.hbm_to_vmem [thread:$0]  %s1, 896, %s26, [#allocation6], 128, 128, 8
    $region5: #{tpu_custom_call.1} parent=1 // pred_fallthru
      _
    // Predicated region
    $region6: #{tpu_custom_call.1} parent=1 // pred_check
      _
    $region7: #{tpu_custom_call.1} parent=1 // pred_check_branch
      %33 = sbr.rel (0) target = $region9
    $region8: #{tpu_custom_call.1} parent=1 // pred_region
      %s35 = ssub.s32 10240, 10240
      %36 = vsyncadd [#allocation9], %s35
      %s37 = sshll.u32 [#allocation8], 4
      %s38 = int_to_ptr.vmem [resolvable:$true] %s37
      %43 = dma.hbm_to_vmem [thread:$0]  %s2, 10240, %s38, [#allocation9], 128, 128, 8
    $region9: #{tpu_custom_call.1} parent=1 // pred_fallthru
      _
    // Predicated region
    $region10: #{tpu_custom_call.1} parent=1 // pred_check
      _
    $region11: #{tpu_custom_call.1} parent=1 // pred_check_branch
      %45 = sbr.rel (0) target = $region13
    $region12: #{tpu_custom_call.1} parent=1 // pred_region
      _
    $region13: #{tpu_custom_call.1} parent=1 // pred_fallthru
      _
    // Predicated region
    $region14: #{tpu_custom_call.1} parent=1 // pred_check
      _
    $region15: #{tpu_custom_call.1} parent=1 // pred_check_branch
      %47 = sbr.rel (0) target = $region17
    $region16: #{tpu_custom_call.1} parent=1 // pred_region
      %s49 = ssub.s32 256, 256
      %50 = vsyncadd [#allocation9], %s49
      %s51 = sshll.u32 [#allocation10], 4
      %s52 = int_to_ptr.vmem [resolvable:$true] %s51
      %57 = dma.hbm_to_vmem [thread:$0]  %s4, 256, %s52, [#allocation9], 128, 128, 8
    $region17: #{tpu_custom_call.1} parent=1 // pred_fallthru
      _
    // Predicated region
    $region18: #{tpu_custom_call.1} parent=1 // pred_check
      _
    $region19: #{tpu_custom_call.1} parent=1 // pred_check_branch
      %59 = sbr.rel (0) target = $region21
    $region20: #{tpu_custom_call.1} parent=1 // pred_region
      %s61 = ssub.s32 2048, 2048
      %62 = vsyncadd [#allocation12], %s61
      %s63 = sshll.u32 [#allocation11], 4
      %s64 = int_to_ptr.vmem [resolvable:$true] %s63
      %69 = dma.hbm_to_vmem [thread:$0]  %s5, 2048, %s64, [#allocation12], 128, 128, 8
    $region21: #{tpu_custom_call.1} parent=1 // pred_fallthru
      _
    // Predicated region
    $region22: #{tpu_custom_call.1} parent=1 // pred_check
      _
    $region23: #{tpu_custom_call.1} parent=1 // pred_check_branch
      %71 = sbr.rel (0) target = $region25
    $region24: #{tpu_custom_call.1} parent=1 // pred_region
      _
    $region25: #{tpu_custom_call.1} parent=1 // pred_fallthru
      _
    // Predicated region
    $region26: #{tpu_custom_call.1} parent=1 // pred_check
      _
    $region27: #{tpu_custom_call.1} parent=1 // pred_check_branch
      %73 = sbr.rel (0) target = $region29
    $region28: #{tpu_custom_call.1} parent=1 // pred_region
      %74 = dma.done [#allocation6], 896
    $region29: #{tpu_custom_call.1} parent=1 // pred_fallthru
      _
    // Predicated region
    $region30: #{tpu_custom_call.1} parent=1 // pred_check
      _
    $region31: #{tpu_custom_call.1} parent=1 // pred_check_branch
      %76 = sbr.rel (0) target = $region33
    $region32: #{tpu_custom_call.1} parent=1 // pred_region
      %77 = dma.done [#allocation9], 10240
    $region33: #{tpu_custom_call.1} parent=1 // pred_fallthru
      _
    // Predicated region
    $region34: #{tpu_custom_call.1} parent=1 // pred_check
      _
    $region35: #{tpu_custom_call.1} parent=1 // pred_check_branch
      %79 = sbr.rel (0) target = $region37
    $region36: #{tpu_custom_call.1} parent=1 // pred_region
      %80 = dma.done [#allocation9], 256
    $region37: #{tpu_custom_call.1} parent=1 // pred_fallthru
      _
    // Predicated region
    $region38: #{tpu_custom_call.1} parent=1 // pred_check
      _
    $region39: #{tpu_custom_call.1} parent=1 // pred_check_branch
      %82 = sbr.rel (0) target = $region41
    $region40: #{tpu_custom_call.1} parent=1 // pred_region
      %83 = dma.done [#allocation12], 2048
    $region41: #{tpu_custom_call.1} parent=1 // pred_fallthru
      _
    %s84 = smul.u32 0, 128
    loop: start=0, step=1, limit=128
    $region42: #{tpu_custom_call.1} parent=1 // loop_pre_header
      _
    $region43: #{tpu_custom_call.1} parent=1 // loop_header
      %s86 = sphi 0, %s90
      %p87 = scmp.ge.s32.totalorder %s86, 128
    $region44: #{tpu_custom_call.1} parent=1 // loop_header_branch
      %89 = sbr.rel (%p87) target = $region48
    $region45: #{tpu_custom_call.1} parent=1 // loop_body
      %s91 = sadd.s32 %s84, %s86
      %s92 = sld [smem:[#allocation4 + %s91]]
      %s93 = scalar_lea.vmem [#allocation5], %s92
      %v94 = vld [vmem:[%s93] sm:$0x1]
      %s95 = scalar_lea.vmem [#allocation2], %s86
      %96 = vst [vmem:[%s95] sm:$0x1] %v94
    $region46: #{tpu_custom_call.1} parent=1 // loop_footer
      %s90 = sadd.s32 1, %s86
    $region47: #{tpu_custom_call.1} parent=1 // loop_footer_branch
      %85 = sbr.rel target = $region43
    $region48: #{tpu_custom_call.1} parent=1 // loop_exit
      _
    %v97 = vld [vmem:[#allocation2] sm:$0xff]
    %v98 = vld [vmem:[#allocation2 + $0x8] sm:$0xff]
    %v99 = vld [vmem:[#allocation2 + $0x10] sm:$0xff]
    %v100 = vld [vmem:[#allocation2 + $0x18] sm:$0xff]
    %v101 = vld [vmem:[#allocation2 + $0x20] sm:$0xff]
    %v102 = vld [vmem:[#allocation2 + $0x28] sm:$0xff]
    %v103 = vld [vmem:[#allocation2 + $0x30] sm:$0xff]
    %v104 = vld [vmem:[#allocation2 + $0x38] sm:$0xff]
    %v105 = vld [vmem:[#allocation2 + $0x40] sm:$0xff]
    %v106 = vld [vmem:[#allocation2 + $0x48] sm:$0xff]
    %v107 = vld [vmem:[#allocation2 + $0x50] sm:$0xff]
    %v108 = vld [vmem:[#allocation2 + $0x58] sm:$0xff]
    %v109 = vld [vmem:[#allocation2 + $0x60] sm:$0xff]
    %v110 = vld [vmem:[#allocation2 + $0x68] sm:$0xff]
    %v111 = vld [vmem:[#allocation2 + $0x70] sm:$0xff]
    %v112 = vld [vmem:[#allocation2 + $0x78] sm:$0xff]
    %v113 = vrot.slane %v97, 1
    %v114 = vrot.slane %v98, 1
    %v115 = vrot.slane %v99, 1
    %v116 = vrot.slane %v100, 1
    %v117 = vrot.slane %v101, 1
    %v118 = vrot.slane %v102, 1
    %v119 = vrot.slane %v103, 1
    %v120 = vrot.slane %v104, 1
    %v121 = vrot.slane %v105, 1
    %v122 = vrot.slane %v106, 1
    %v123 = vrot.slane %v107, 1
    %v124 = vrot.slane %v108, 1
    %v125 = vrot.slane %v109, 1
    %v126 = vrot.slane %v110, 1
    %v127 = vrot.slane %v111, 1
    %v128 = vrot.slane %v112, 1
    %v129 = vlaneseq
    %v130 = vshrl.u32 %v129, 7
    %vm131 = vcmp.lt.s32.totalorder %v130, 7
    %v132 = vsel %vm131, %v127, %v128
    %v133 = vsel %vm131, %v126, %v127
    %v134 = vsel %vm131, %v125, %v126
    %v135 = vsel %vm131, %v124, %v125
    %v136 = vsel %vm131, %v123, %v124
    %v137 = vsel %vm131, %v122, %v123
    %v138 = vsel %vm131, %v121, %v122
    %v139 = vsel %vm131, %v120, %v121
    %v140 = vsel %vm131, %v119, %v120
    %v141 = vsel %vm131, %v118, %v119
    %v142 = vsel %vm131, %v117, %v118
    %v143 = vsel %vm131, %v116, %v117
    %v144 = vsel %vm131, %v115, %v116
    %v145 = vsel %vm131, %v114, %v115
    %v146 = vsel %vm131, %v113, %v114
    %v147 = vsel %vm131, %v128, %v113
    %v148 = vrot.slane %v97, 2
    %v149 = vrot.slane %v98, 2
    %v150 = vrot.slane %v99, 2
    %v151 = vrot.slane %v100, 2
    %v152 = vrot.slane %v101, 2
    %v153 = vrot.slane %v102, 2
    %v154 = vrot.slane %v103, 2
    %v155 = vrot.slane %v104, 2
    %v156 = vrot.slane %v105, 2
    %v157 = vrot.slane %v106, 2
    %v158 = vrot.slane %v107, 2
    %v159 = vrot.slane %v108, 2
    %v160 = vrot.slane %v109, 2
    %v161 = vrot.slane %v110, 2
    %v162 = vrot.slane %v111, 2
    %v163 = vrot.slane %v112, 2
    %vm164 = vcmp.lt.s32.totalorder %v130, 6
    %v165 = vsel %vm164, %v162, %v163
    %v166 = vsel %vm164, %v161, %v162
    %v167 = vsel %vm164, %v160, %v161
    %v168 = vsel %vm164, %v159, %v160
    %v169 = vsel %vm164, %v158, %v159
    %v170 = vsel %vm164, %v157, %v158
    %v171 = vsel %vm164, %v156, %v157
    %v172 = vsel %vm164, %v155, %v156
    %v173 = vsel %vm164, %v154, %v155
    %v174 = vsel %vm164, %v153, %v154
    %v175 = vsel %vm164, %v152, %v153
    %v176 = vsel %vm164, %v151, %v152
    %v177 = vsel %vm164, %v150, %v151
    %v178 = vsel %vm164, %v149, %v150
    %v179 = vsel %vm164, %v148, %v149
    %v180 = vsel %vm164, %v163, %v148
    %v181 = vrot.slane %v97, 3
    %v182 = vrot.slane %v98, 3
    %v183 = vrot.slane %v99, 3
    %v184 = vrot.slane %v100, 3
    %v185 = vrot.slane %v101, 3
    %v186 = vrot.slane %v102, 3
    %v187 = vrot.slane %v103, 3
    %v188 = vrot.slane %v104, 3
    %v189 = vrot.slane %v105, 3
    %v190 = vrot.slane %v106, 3
    %v191 = vrot.slane %v107, 3
    %v192 = vrot.slane %v108, 3
    %v193 = vrot.slane %v109, 3
    %v194 = vrot.slane %v110, 3
    %v195 = vrot.slane %v111, 3
    %v196 = vrot.slane %v112, 3
    %vm197 = vcmp.lt.s32.totalorder %v130, 5
    %v198 = vsel %vm197, %v195, %v196
    %v199 = vsel %vm197, %v194, %v195
    %v200 = vsel %vm197, %v193, %v194
    %v201 = vsel %vm197, %v192, %v193
    %v202 = vsel %vm197, %v191, %v192
    %v203 = vsel %vm197, %v190, %v191
    %v204 = vsel %vm197, %v189, %v190
    %v205 = vsel %vm197, %v188, %v189
    %v206 = vsel %vm197, %v187, %v188
    %v207 = vsel %vm197, %v186, %v187
    %v208 = vsel %vm197, %v185, %v186
    %v209 = vsel %vm197, %v184, %v185
    %v210 = vsel %vm197, %v183, %v184
    %v211 = vsel %vm197, %v182, %v183
    %v212 = vsel %vm197, %v181, %v182
    %v213 = vsel %vm197, %v196, %v181
    %v214 = vrot.slane %v97, 4
    %v215 = vrot.slane %v98, 4
    %v216 = vrot.slane %v99, 4
    %v217 = vrot.slane %v100, 4
    %v218 = vrot.slane %v101, 4
    %v219 = vrot.slane %v102, 4
    %v220 = vrot.slane %v103, 4
    %v221 = vrot.slane %v104, 4
    %v222 = vrot.slane %v105, 4
    %v223 = vrot.slane %v106, 4
    %v224 = vrot.slane %v107, 4
    %v225 = vrot.slane %v108, 4
    %v226 = vrot.slane %v109, 4
    %v227 = vrot.slane %v110, 4
    %v228 = vrot.slane %v111, 4
    %v229 = vrot.slane %v112, 4
    %vm230 = vcmp.lt.s32.totalorder %v130, 4
    %v231 = vsel %vm230, %v228, %v229
    %v232 = vsel %vm230, %v227, %v228
    %v233 = vsel %vm230, %v226, %v227
    %v234 = vsel %vm230, %v225, %v226
    %v235 = vsel %vm230, %v224, %v225
    %v236 = vsel %vm230, %v223, %v224
    %v237 = vsel %vm230, %v222, %v223
    %v238 = vsel %vm230, %v221, %v222
    %v239 = vsel %vm230, %v220, %v221
    %v240 = vsel %vm230, %v219, %v220
    %v241 = vsel %vm230, %v218, %v219
    %v242 = vsel %vm230, %v217, %v218
    %v243 = vsel %vm230, %v216, %v217
    %v244 = vsel %vm230, %v215, %v216
    %v245 = vsel %vm230, %v214, %v215
    %v246 = vsel %vm230, %v229, %v214
    %v247 = vld [vmem:[#allocation8] sm:$0xff]
    %v248 = vld [vmem:[#allocation8 + $0x8] sm:$0xff]
    %v249 = vld [vmem:[#allocation8 + $0x10] sm:$0xff]
    %v250 = vld [vmem:[#allocation8 + $0x18] sm:$0xff]
    %v251 = vld [vmem:[#allocation8 + $0x20] sm:$0xff]
    %v252 = vld [vmem:[#allocation8 + $0x28] sm:$0xff]
    %v253 = vld [vmem:[#allocation8 + $0x30] sm:$0xff]
    %v254 = vld [vmem:[#allocation8 + $0x38] sm:$0xff]
    %v255 = vld [vmem:[#allocation8 + $0x40] sm:$0xff]
    %v256 = vld [vmem:[#allocation8 + $0x48] sm:$0xff]
    %v257 = vld [vmem:[#allocation8 + $0x50] sm:$0xff]
    %v258 = vld [vmem:[#allocation8 + $0x58] sm:$0xff]
    %v259 = vld [vmem:[#allocation8 + $0x60] sm:$0xff]
    %v260 = vld [vmem:[#allocation8 + $0x68] sm:$0xff]
    %v261 = vld [vmem:[#allocation8 + $0x70] sm:$0xff]
    %v262 = vld [vmem:[#allocation8 + $0x78] sm:$0xff]
    %v263 = vld [vmem:[#allocation8 + $0x80] sm:$0xff]
    %v264 = vld [vmem:[#allocation8 + $0x88] sm:$0xff]
    %v265 = vld [vmem:[#allocation8 + $0x90] sm:$0xff]
    %v266 = vld [vmem:[#allocation8 + $0x98] sm:$0xff]
    %v267 = vld [vmem:[#allocation8 + $0xa0] sm:$0xff]
    %v268 = vld [vmem:[#allocation8 + $0xa8] sm:$0xff]
    %v269 = vld [vmem:[#allocation8 + $0xb0] sm:$0xff]
    %v270 = vld [vmem:[#allocation8 + $0xb8] sm:$0xff]
    %v271 = vld [vmem:[#allocation8 + $0xc0] sm:$0xff]
    %v272 = vld [vmem:[#allocation8 + $0xc8] sm:$0xff]
    %v273 = vld [vmem:[#allocation8 + $0xd0] sm:$0xff]
    %v274 = vld [vmem:[#allocation8 + $0xd8] sm:$0xff]
    %v275 = vld [vmem:[#allocation8 + $0xe0] sm:$0xff]
    %v276 = vld [vmem:[#allocation8 + $0xe8] sm:$0xff]
    %v277 = vld [vmem:[#allocation8 + $0xf0] sm:$0xff]
    %v278 = vld [vmem:[#allocation8 + $0xf8] sm:$0xff]
    %v279 = vld [vmem:[#allocation8 + $0x100] sm:$0xff]
    %v280 = vld [vmem:[#allocation8 + $0x108] sm:$0xff]
    %v281 = vld [vmem:[#allocation8 + $0x110] sm:$0xff]
    %v282 = vld [vmem:[#allocation8 + $0x118] sm:$0xff]
    %v283 = vld [vmem:[#allocation8 + $0x120] sm:$0xff]
    %v284 = vld [vmem:[#allocation8 + $0x128] sm:$0xff]
    %v285 = vld [vmem:[#allocation8 + $0x130] sm:$0xff]
    %v286 = vld [vmem:[#allocation8 + $0x138] sm:$0xff]
    %v287 = vld [vmem:[#allocation8 + $0x140] sm:$0xff]
    %v288 = vld [vmem:[#allocation8 + $0x148] sm:$0xff]
    %v289 = vld [vmem:[#allocation8 + $0x150] sm:$0xff]
    %v290 = vld [vmem:[#allocation8 + $0x158] sm:$0xff]
    %v291 = vld [vmem:[#allocation8 + $0x160] sm:$0xff]
    %v292 = vld [vmem:[#allocation8 + $0x168] sm:$0xff]
    %v293 = vld [vmem:[#allocation8 + $0x170] sm:$0xff]
    %v294 = vld [vmem:[#allocation8 + $0x178] sm:$0xff]
    %v295 = vld [vmem:[#allocation8 + $0x180] sm:$0xff]
    %v296 = vld [vmem:[#allocation8 + $0x188] sm:$0xff]
    %v297 = vld [vmem:[#allocation8 + $0x190] sm:$0xff]
    %v298 = vld [vmem:[#allocation8 + $0x198] sm:$0xff]
    %v299 = vld [vmem:[#allocation8 + $0x1a0] sm:$0xff]
    %v300 = vld [vmem:[#allocation8 + $0x1a8] sm:$0xff]
    %v301 = vld [vmem:[#allocation8 + $0x1b0] sm:$0xff]
    %v302 = vld [vmem:[#allocation8 + $0x1b8] sm:$0xff]
    %v303 = vld [vmem:[#allocation8 + $0x1c0] sm:$0xff]
    %v304 = vld [vmem:[#allocation8 + $0x1c8] sm:$0xff]
    %v305 = vld [vmem:[#allocation8 + $0x1d0] sm:$0xff]
    %v306 = vld [vmem:[#allocation8 + $0x1d8] sm:$0xff]
    %v307 = vld [vmem:[#allocation8 + $0x1e0] sm:$0xff]
    %v308 = vld [vmem:[#allocation8 + $0x1e8] sm:$0xff]
    %v309 = vld [vmem:[#allocation8 + $0x1f0] sm:$0xff]
    %v310 = vld [vmem:[#allocation8 + $0x1f8] sm:$0xff]
    %v311 = vld [vmem:[#allocation8 + $0x200] sm:$0xff]
    %v312 = vld [vmem:[#allocation8 + $0x208] sm:$0xff]
    %v313 = vld [vmem:[#allocation8 + $0x210] sm:$0xff]
    %v314 = vld [vmem:[#allocation8 + $0x218] sm:$0xff]
    %v315 = vld [vmem:[#allocation8 + $0x220] sm:$0xff]
    %v316 = vld [vmem:[#allocation8 + $0x228] sm:$0xff]
    %v317 = vld [vmem:[#allocation8 + $0x230] sm:$0xff]
    %v318 = vld [vmem:[#allocation8 + $0x238] sm:$0xff]
    %v319 = vld [vmem:[#allocation8 + $0x240] sm:$0xff]
    %v320 = vld [vmem:[#allocation8 + $0x248] sm:$0xff]
    %v321 = vld [vmem:[#allocation8 + $0x250] sm:$0xff]
    %v322 = vld [vmem:[#allocation8 + $0x258] sm:$0xff]
    %v323 = vld [vmem:[#allocation8 + $0x260] sm:$0xff]
    %v324 = vld [vmem:[#allocation8 + $0x268] sm:$0xff]
    %v325 = vld [vmem:[#allocation8 + $0x270] sm:$0xff]
    %v326 = vld [vmem:[#allocation8 + $0x278] sm:$0xff]
    %327 = vmatprep.subr.mxu0 0.0
    %328 = vmatpush1.msra.mxu0 %v247
    %329 = vmatprep.subr.mxu0 0.0
    %330 = vmatpush1.msra.mxu0 %v248
    %331 = vmatprep.subr.mxu0 0.0
    %332 = vmatpush1.msra.mxu0 %v249
    %333 = vmatprep.subr.mxu0 0.0
    %334 = vmatpush1.msra.mxu0 %v250
    %335 = vmatprep.subr.mxu0 0.0
    %336 = vmatpush1.msra.mxu0 %v251
    %337 = vmatprep.subr.mxu0 0.0
    %338 = vmatpush1.msra.mxu0 %v252
    %339 = vmatprep.subr.mxu0 0.0
    %340 = vmatpush1.msra.mxu0 %v253
    %341 = vmatprep.subr.mxu0 0.0
    %342 = vmatpush1.msra.mxu0 %v254
    %343 = vmatprep.subr.mxu0 0.0
    %344 = vmatpush1.msra.mxu0 %v255
    %345 = vmatprep.subr.mxu0 0.0
    %346 = vmatpush1.msra.mxu0 %v256
    %347 = vmatprep.subr.mxu0 0.0
    %348 = vmatpush1.msra.mxu0 %v257
    %349 = vmatprep.subr.mxu0 0.0
    %350 = vmatpush1.msra.mxu0 %v258
    %351 = vmatprep.subr.mxu0 0.0
    %352 = vmatpush1.msra.mxu0 %v259
    %353 = vmatprep.subr.mxu0 0.0
    %354 = vmatpush1.msra.mxu0 %v260
    %355 = vmatprep.subr.mxu0 0.0
    %356 = vmatpush1.msra.mxu0 %v261
    %357 = vmatprep.subr.mxu0 0.0
    %358 = vmatpush1.msra.mxu0 %v262
    %359 = vmatprep.subr.mxu0 0.0
    %360 = vmatpush1.msra.mxu0 %v263
    %361 = vmatprep.subr.mxu0 0.0
    %362 = vmatpush1.msra.mxu0 %v264
    %363 = vmatprep.subr.mxu0 0.0
    %364 = vmatpush1.msra.mxu0 %v265
    %365 = vmatprep.subr.mxu0 0.0
    %366 = vmatpush1.msra.mxu0 %v266
    %367 = vmatprep.subr.mxu0 0.0
    %368 = vmatpush1.msra.mxu0 %v267
    %369 = vmatprep.subr.mxu0 0.0
    %370 = vmatpush1.msra.mxu0 %v268
    %371 = vmatprep.subr.mxu0 0.0
    %372 = vmatpush1.msra.mxu0 %v269
    %373 = vmatprep.subr.mxu0 0.0
    %374 = vmatpush1.msra.mxu0 %v270
    %375 = vmatprep.subr.mxu0 0.0
    %376 = vmatpush1.msra.mxu0 %v271
    %377 = vmatprep.subr.mxu0 0.0
    %378 = vmatpush1.msra.mxu0 %v272
    %379 = vmatprep.subr.mxu0 0.0
    %380 = vmatpush1.msra.mxu0 %v273
    %381 = vmatprep.subr.mxu0 0.0
    %382 = vmatpush1.msra.mxu0 %v274
    %383 = vmatprep.subr.mxu0 0.0
    %384 = vmatpush1.msra.mxu0 %v275
    %385 = vmatprep.subr.mxu0 0.0
    %386 = vmatpush1.msra.mxu0 %v276
    %387 = vmatprep.subr.mxu0 0.0
    %388 = vmatpush1.msra.mxu0 %v277
    %389 = vmatprep.subr.mxu0 0.0
    %390 = vmatpush1.msra.mxu0 %v278
    %391 = vmatprep.mubr.f32.mxu0 %v146
    %392 = vmatmul.mubr.f32.gmra.mrb[0].mxu0 %v97
    %v393 = vpop.f32.mrb[0].mxu0
    %v394 = vadd.f32 0.0, %v393
    %v395 = vpop.f32.mrb[0].mxu0
    %396 = vmatprep.mubr.f32.mxu0 %v145
    %397 = vmatmul.mubr.f32.gmra.mrb[0].mxu0 %v98
    %v398 = vpop.f32.mrb[0].mxu0
    %v399 = vadd.f32 0.0, %v398
    %v400 = vpop.f32.mrb[0].mxu0
    %401 = vmatprep.mubr.f32.mxu0 %v144
    %402 = vmatmul.mubr.f32.gmra.mrb[0].mxu0 %v99
    %v403 = vpop.f32.mrb[0].mxu0
    %v404 = vadd.f32 0.0, %v403
    %v405 = vpop.f32.mrb[0].mxu0
    %406 = vmatprep.mubr.f32.mxu0 %v143
    %407 = vmatmul.mubr.f32.gmra.mrb[0].mxu0 %v100
    %v408 = vpop.f32.mrb[0].mxu0
    %v409 = vadd.f32 0.0, %v408
    %v410 = vpop.f32.mrb[0].mxu0
    %411 = vmatprep.mubr.f32.mxu0 %v142
    %412 = vmatmul.mubr.f32.gmra.mrb[0].mxu0 %v101
    %v413 = vpop.f32.mrb[0].mxu0
    %v414 = vadd.f32 0.0, %v413
    %v415 = vpop.f32.mrb[0].mxu0
    %416 = vmatprep.mubr.f32.mxu0 %v141
    %417 = vmatmul.mubr.f32.gmra.mrb[0].mxu0 %v102
    %v418 = vpop.f32.mrb[0].mxu0
    %v419 = vadd.f32 0.0, %v418
    %v420 = vpop.f32.mrb[0].mxu0
    %421 = vmatprep.mubr.f32.mxu0 %v140
    %422 = vmatmul.mubr.f32.gmra.mrb[0].mxu0 %v103
    %v423 = vpop.f32.mrb[0].mxu0
    %v424 = vadd.f32 0.0, %v423
    %v425 = vpop.f32.mrb[0].mxu0
    %426 = vmatprep.mubr.f32.mxu0 %v139
    %427 = vmatmul.mubr.f32.gmra.mrb[0].mxu0 %v104
    %v428 = vpop.f32.mrb[0].mxu0
    %v429 = vadd.f32 0.0, %v428
    %v430 = vpop.f32.mrb[0].mxu0
    %431 = vmatprep.mubr.f32.mxu0 %v138
    %432 = vmatmul.mubr.f32.gmra.mrb[0].mxu0 %v105
    %v433 = vpop.f32.mrb[0].mxu0
    %v434 = vadd.f32 0.0, %v433
    %v435 = vpop.f32.mrb[0].mxu0
    %436 = vmatprep.mubr.f32.mxu0 %v137
    %437 = vmatmul.mubr.f32.gmra.mrb[0].mxu0 %v106
    %v438 = vpop.f32.mrb[0].mxu0
    %v439 = vadd.f32 0.0, %v438
    %v440 = vpop.f32.mrb[0].mxu0
    %441 = vmatprep.mubr.f32.mxu0 %v136
    %442 = vmatmul.mubr.f32.gmra.mrb[0].mxu0 %v107
    %v443 = vpop.f32.mrb[0].mxu0
    %v444 = vadd.f32 0.0, %v443
    %v445 = vpop.f32.mrb[0].mxu0
    %446 = vmatprep.mubr.f32.mxu0 %v135
    %447 = vmatmul.mubr.f32.gmra.mrb[0].mxu0 %v108
    %v448 = vpop.f32.mrb[0].mxu0
    %v449 = vadd.f32 0.0, %v448
    %v450 = vpop.f32.mrb[0].mxu0
    %451 = vmatprep.mubr.f32.mxu0 %v134
    %452 = vmatmul.mubr.f32.gmra.mrb[0].mxu0 %v109
    %v453 = vpop.f32.mrb[0].mxu0
    %v454 = vadd.f32 0.0, %v453
    %v455 = vpop.f32.mrb[0].mxu0
    %456 = vmatprep.mubr.f32.mxu0 %v133
    %457 = vmatmul.mubr.f32.gmra.mrb[0].mxu0 %v110
    %v458 = vpop.f32.mrb[0].mxu0
    %v459 = vadd.f32 0.0, %v458
    %v460 = vpop.f32.mrb[0].mxu0
    %461 = vmatprep.mubr.f32.mxu0 %v132
    %462 = vmatmul.mubr.f32.gmra.mrb[0].mxu0 %v111
    %v463 = vpop.f32.mrb[0].mxu0
    %v464 = vadd.f32 0.0, %v463
    %v465 = vpop.f32.mrb[0].mxu0
    %466 = vmatprep.mubr.f32.mxu0 %v147
    %467 = vmatmul.mubr.f32.gmra.mrb[0].mxu0 %v112
    %v468 = vpop.f32.mrb[0].mxu0
    %v469 = vadd.f32 0.0, %v468
    %v470 = vpop.f32.mrb[0].mxu0
    %471 = vdwg.mxu0
    %472 = vmatprep.subr.mxu0 0.0
    %473 = vmatpush1.msra.mxu0 %v279
    %474 = vmatprep.subr.mxu0 0.0
    %475 = vmatpush1.msra.mxu0 %v280
    %476 = vmatprep.subr.mxu0 0.0
    %477 = vmatpush1.msra.mxu0 %v281
    %478 = vmatprep.subr.mxu0 0.0
    %479 = vmatpush1.msra.mxu0 %v282
    %480 = vmatprep.subr.mxu0 0.0
    %481 = vmatpush1.msra.mxu0 %v283
    %482 = vmatprep.subr.mxu0 0.0
    %483 = vmatpush1.msra.mxu0 %v284
    %484 = vmatprep.subr.mxu0 0.0
    %485 = vmatpush1.msra.mxu0 %v285
    %486 = vmatprep.subr.mxu0 0.0
    %487 = vmatpush1.msra.mxu0 %v286
    %488 = vmatprep.subr.mxu0 0.0
    %489 = vmatpush1.msra.mxu0 %v287
    %490 = vmatprep.subr.mxu0 0.0
    %491 = vmatpush1.msra.mxu0 %v288
    %492 = vmatprep.subr.mxu0 0.0
    %493 = vmatpush1.msra.mxu0 %v289
    %494 = vmatprep.subr.mxu0 0.0
    %495 = vmatpush1.msra.mxu0 %v290
    %496 = vmatprep.subr.mxu0 0.0
    %497 = vmatpush1.msra.mxu0 %v291
    %498 = vmatprep.subr.mxu0 0.0
    %499 = vmatpush1.msra.mxu0 %v292
    %500 = vmatprep.subr.mxu0 0.0
    %501 = vmatpush1.msra.mxu0 %v293
    %502 = vmatprep.subr.mxu0 0.0
    %503 = vmatpush1.msra.mxu0 %v294
    %504 = vmatprep.subr.mxu0 0.0
    %505 = vmatpush1.msra.mxu0 %v295
    %506 = vmatprep.subr.mxu0 0.0
    %507 = vmatpush1.msra.mxu0 %v296
    %508 = vmatprep.subr.mxu0 0.0
    %509 = vmatpush1.msra.mxu0 %v297
    %510 = vmatprep.subr.mxu0 0.0
    %511 = vmatpush1.msra.mxu0 %v298
    %512 = vmatprep.subr.mxu0 0.0
    %513 = vmatpush1.msra.mxu0 %v299
    %514 = vmatprep.subr.mxu0 0.0
    %515 = vmatpush1.msra.mxu0 %v300
    %516 = vmatprep.subr.mxu0 0.0
    %517 = vmatpush1.msra.mxu0 %v301
    %518 = vmatprep.subr.mxu0 0.0
    %519 = vmatpush1.msra.mxu0 %v302
    %520 = vmatprep.subr.mxu0 0.0
    %521 = vmatpush1.msra.mxu0 %v303
    %522 = vmatprep.subr.mxu0 0.0
    %523 = vmatpush1.msra.mxu0 %v304
    %524 = vmatprep.subr.mxu0 0.0
    %525 = vmatpush1.msra.mxu0 %v305
    %526 = vmatprep.subr.mxu0 0.0
    %527 = vmatpush1.msra.mxu0 %v306
    %528 = vmatprep.subr.mxu0 0.0
    %529 = vmatpush1.msra.mxu0 %v307
    %530 = vmatprep.subr.mxu0 0.0
    %531 = vmatpush1.msra.mxu0 %v308
    %532 = vmatprep.subr.mxu0 0.0
    %533 = vmatpush1.msra.mxu0 %v309
    %534 = vmatprep.subr.mxu0 0.0
    %535 = vmatpush1.msra.mxu0 %v310
    %536 = vmatprep.mubr.f32.mxu0 %v212
    %537 = vmatmul.mubr.f32.gmra.mrb[0].mxu0 %v179
    %v538 = vpop.f32.mrb[0].mxu0
    %v539 = vadd.f32 %v394, %v538
    %v540 = vpop.f32.mrb[0].mxu0
    %541 = vmatprep.mubr.f32.mxu0 %v211
    %542 = vmatmul.mubr.f32.gmra.mrb[0].mxu0 %v178
    %v543 = vpop.f32.mrb[0].mxu0
    %v544 = vadd.f32 %v399, %v543
    %v545 = vpop.f32.mrb[0].mxu0
    %546 = vmatprep.mubr.f32.mxu0 %v210
    %547 = vmatmul.mubr.f32.gmra.mrb[0].mxu0 %v177
    %v548 = vpop.f32.mrb[0].mxu0
    %v549 = vadd.f32 %v404, %v548
    %v550 = vpop.f32.mrb[0].mxu0
    %551 = vmatprep.mubr.f32.mxu0 %v209
    %552 = vmatmul.mubr.f32.gmra.mrb[0].mxu0 %v176
    %v553 = vpop.f32.mrb[0].mxu0
    %v554 = vadd.f32 %v409, %v553
    %v555 = vpop.f32.mrb[0].mxu0
    %556 = vmatprep.mubr.f32.mxu0 %v208
    %557 = vmatmul.mubr.f32.gmra.mrb[0].mxu0 %v175
    %v558 = vpop.f32.mrb[0].mxu0
    %v559 = vadd.f32 %v414, %v558
    %v560 = vpop.f32.mrb[0].mxu0
    %561 = vmatprep.mubr.f32.mxu0 %v207
    %562 = vmatmul.mubr.f32.gmra.mrb[0].mxu0 %v174
    %v563 = vpop.f32.mrb[0].mxu0
    %v564 = vadd.f32 %v419, %v563
    %v565 = vpop.f32.mrb[0].mxu0
    %566 = vmatprep.mubr.f32.mxu0 %v206
    %567 = vmatmul.mubr.f32.gmra.mrb[0].mxu0 %v173
    %v568 = vpop.f32.mrb[0].mxu0
    %v569 = vadd.f32 %v424, %v568
    %v570 = vpop.f32.mrb[0].mxu0
    %571 = vmatprep.mubr.f32.mxu0 %v205
    %572 = vmatmul.mubr.f32.gmra.mrb[0].mxu0 %v172
    %v573 = vpop.f32.mrb[0].mxu0
    %v574 = vadd.f32 %v429, %v573
    %v575 = vpop.f32.mrb[0].mxu0
    %576 = vmatprep.mubr.f32.mxu0 %v204
    %577 = vmatmul.mubr.f32.gmra.mrb[0].mxu0 %v171
    %v578 = vpop.f32.mrb[0].mxu0
    %v579 = vadd.f32 %v434, %v578
    %v580 = vpop.f32.mrb[0].mxu0
    %581 = vmatprep.mubr.f32.mxu0 %v203
    %582 = vmatmul.mubr.f32.gmra.mrb[0].mxu0 %v170
    %v583 = vpop.f32.mrb[0].mxu0
    %v584 = vadd.f32 %v439, %v583
    %v585 = vpop.f32.mrb[0].mxu0
    %586 = vmatprep.mubr.f32.mxu0 %v202
    %587 = vmatmul.mubr.f32.gmra.mrb[0].mxu0 %v169
    %v588 = vpop.f32.mrb[0].mxu0
    %v589 = vadd.f32 %v444, %v588
    %v590 = vpop.f32.mrb[0].mxu0
    %591 = vmatprep.mubr.f32.mxu0 %v201
    %592 = vmatmul.mubr.f32.gmra.mrb[0].mxu0 %v168
    %v593 = vpop.f32.mrb[0].mxu0
    %v594 = vadd.f32 %v449, %v593
    %v595 = vpop.f32.mrb[0].mxu0
    %596 = vmatprep.mubr.f32.mxu0 %v200
    %597 = vmatmul.mubr.f32.gmra.mrb[0].mxu0 %v167
    %v598 = vpop.f32.mrb[0].mxu0
    %v599 = vadd.f32 %v454, %v598
    %v600 = vpop.f32.mrb[0].mxu0
    %601 = vmatprep.mubr.f32.mxu0 %v199
    %602 = vmatmul.mubr.f32.gmra.mrb[0].mxu0 %v166
    %v603 = vpop.f32.mrb[0].mxu0
    %v604 = vadd.f32 %v459, %v603
    %v605 = vpop.f32.mrb[0].mxu0
    %606 = vmatprep.mubr.f32.mxu0 %v198
    %607 = vmatmul.mubr.f32.gmra.mrb[0].mxu0 %v165
    %v608 = vpop.f32.mrb[0].mxu0
    %v609 = vadd.f32 %v464, %v608
    %v610 = vpop.f32.mrb[0].mxu0
    %611 = vmatprep.mubr.f32.mxu0 %v213
    %612 = vmatmul.mubr.f32.gmra.mrb[0].mxu0 %v180
    %v613 = vpop.f32.mrb[0].mxu0
    %v614 = vadd.f32 %v469, %v613
    %v615 = vpop.f32.mrb[0].mxu0
    %616 = vdwg.mxu0
    %617 = vmatprep.subr.mxu0 0.0
    %618 = vmatpush1.msra.mxu0 %v311
    %619 = vmatprep.subr.mxu0 0.0
    %620 = vmatpush1.msra.mxu0 %v312
    %621 = vmatprep.subr.mxu0 0.0
    %622 = vmatpush1.msra.mxu0 %v313
    %623 = vmatprep.subr.mxu0 0.0
    %624 = vmatpush1.msra.mxu0 %v314
    %625 = vmatprep.subr.mxu0 0.0
    %626 = vmatpush1.msra.mxu0 %v315
    %627 = vmatprep.subr.mxu0 0.0
    %628 = vmatpush1.msra.mxu0 %v316
    %629 = vmatprep.subr.mxu0 0.0
    %630 = vmatpush1.msra.mxu0 %v317
    %631 = vmatprep.subr.mxu0 0.0
    %632 = vmatpush1.msra.mxu0 %v318
    %633 = vmatprep.subr.mxu0 0.0
    %634 = vmatpush1.msra.mxu0 %v319
    %635 = vmatprep.subr.mxu0 0.0
    %636 = vmatpush1.msra.mxu0 %v320
    %637 = vmatprep.subr.mxu0 0.0
    %638 = vmatpush1.msra.mxu0 %v321
    %639 = vmatprep.subr.mxu0 0.0
    %640 = vmatpush1.msra.mxu0 %v322
    %641 = vmatprep.subr.mxu0 0.0
    %642 = vmatpush1.msra.mxu0 %v323
    %643 = vmatprep.subr.mxu0 0.0
    %644 = vmatpush1.msra.mxu0 %v324
    %645 = vmatprep.subr.mxu0 0.0
    %646 = vmatpush1.msra.mxu0 %v325
    %647 = vmatprep.subr.mxu0 0.0
    %648 = vmatpush1.msra.mxu0 %v326
    %649 = vmatprep.subr.mxu0 0.0
    %650 = vmatpush1.msra.mxu0 0.0
    %651 = vmatprep.subr.mxu0 0.0
    %652 = vmatpush1.msra.mxu0 0.0
    %653 = vmatprep.subr.mxu0 0.0
    %654 = vmatpush1.msra.mxu0 0.0
    %655 = vmatprep.subr.mxu0 0.0
    %656 = vmatpush1.msra.mxu0 0.0
    %657 = vmatprep.subr.mxu0 0.0
    %658 = vmatpush1.msra.mxu0 0.0
    %659 = vmatprep.subr.mxu0 0.0
    %660 = vmatpush1.msra.mxu0 0.0
    %661 = vmatprep.subr.mxu0 0.0
    %662 = vmatpush1.msra.mxu0 0.0
    %663 = vmatprep.subr.mxu0 0.0
    %664 = vmatpush1.msra.mxu0 0.0
    %665 = vmatprep.subr.mxu0 0.0
    %666 = vmatpush1.msra.mxu0 0.0
    %667 = vmatprep.subr.mxu0 0.0
    %668 = vmatpush1.msra.mxu0 0.0
    %669 = vmatprep.subr.mxu0 0.0
    %670 = vmatpush1.msra.mxu0 0.0
    %671 = vmatprep.subr.mxu0 0.0
    %672 = vmatpush1.msra.mxu0 0.0
    %673 = vmatprep.subr.mxu0 0.0
    %674 = vmatpush1.msra.mxu0 0.0
    %675 = vmatprep.subr.mxu0 0.0
    %676 = vmatpush1.msra.mxu0 0.0
    %677 = vmatprep.subr.mxu0 0.0
    %678 = vmatpush1.msra.mxu0 0.0
    %679 = vmatprep.subr.mxu0 0.0
    %680 = vmatpush1.msra.mxu0 0.0
    %681 = vmatprep.mubr.f32.mxu0 0.0
    %682 = vmatmul.mubr.f32.gmra.mrb[0].mxu0 %v245
    %v683 = vpop.f32.mrb[0].mxu0
    %v684 = vadd.f32 %v539, %v683
    %v685 = vpop.f32.mrb[0].mxu0
    %686 = vmatprep.mubr.f32.mxu0 0.0
    %687 = vmatmul.mubr.f32.gmra.mrb[0].mxu0 %v244
    %v688 = vpop.f32.mrb[0].mxu0
    %v689 = vadd.f32 %v544, %v688
    %v690 = vpop.f32.mrb[0].mxu0
    %691 = vmatprep.mubr.f32.mxu0 0.0
    %692 = vmatmul.mubr.f32.gmra.mrb[0].mxu0 %v243
    %v693 = vpop.f32.mrb[0].mxu0
    %v694 = vadd.f32 %v549, %v693
    %v695 = vpop.f32.mrb[0].mxu0
    %696 = vmatprep.mubr.f32.mxu0 0.0
    %697 = vmatmul.mubr.f32.gmra.mrb[0].mxu0 %v242
    %v698 = vpop.f32.mrb[0].mxu0
    %v699 = vadd.f32 %v554, %v698
    %v700 = vpop.f32.mrb[0].mxu0
    %701 = vmatprep.mubr.f32.mxu0 0.0
    %702 = vmatmul.mubr.f32.gmra.mrb[0].mxu0 %v241
    %v703 = vpop.f32.mrb[0].mxu0
    %v704 = vadd.f32 %v559, %v703
    %v705 = vpop.f32.mrb[0].mxu0
    %706 = vmatprep.mubr.f32.mxu0 0.0
    %707 = vmatmul.mubr.f32.gmra.mrb[0].mxu0 %v240
    %v708 = vpop.f32.mrb[0].mxu0
    %v709 = vadd.f32 %v564, %v708
    %v710 = vpop.f32.mrb[0].mxu0
    %711 = vmatprep.mubr.f32.mxu0 0.0
    %712 = vmatmul.mubr.f32.gmra.mrb[0].mxu0 %v239
    %v713 = vpop.f32.mrb[0].mxu0
    %v714 = vadd.f32 %v569, %v713
    %v715 = vpop.f32.mrb[0].mxu0
    %716 = vmatprep.mubr.f32.mxu0 0.0
    %717 = vmatmul.mubr.f32.gmra.mrb[0].mxu0 %v238
    %v718 = vpop.f32.mrb[0].mxu0
    %v719 = vadd.f32 %v574, %v718
    %v720 = vpop.f32.mrb[0].mxu0
    %721 = vmatprep.mubr.f32.mxu0 0.0
    %722 = vmatmul.mubr.f32.gmra.mrb[0].mxu0 %v237
    %v723 = vpop.f32.mrb[0].mxu0
    %v724 = vadd.f32 %v579, %v723
    %v725 = vpop.f32.mrb[0].mxu0
    %726 = vmatprep.mubr.f32.mxu0 0.0
    %727 = vmatmul.mubr.f32.gmra.mrb[0].mxu0 %v236
    %v728 = vpop.f32.mrb[0].mxu0
    %v729 = vadd.f32 %v584, %v728
    %v730 = vpop.f32.mrb[0].mxu0
    %731 = vmatprep.mubr.f32.mxu0 0.0
    %732 = vmatmul.mubr.f32.gmra.mrb[0].mxu0 %v235
    %v733 = vpop.f32.mrb[0].mxu0
    %v734 = vadd.f32 %v589, %v733
    %v735 = vpop.f32.mrb[0].mxu0
    %736 = vmatprep.mubr.f32.mxu0 0.0
    %737 = vmatmul.mubr.f32.gmra.mrb[0].mxu0 %v234
    %v738 = vpop.f32.mrb[0].mxu0
    %v739 = vadd.f32 %v594, %v738
    %v740 = vpop.f32.mrb[0].mxu0
    %741 = vmatprep.mubr.f32.mxu0 0.0
    %742 = vmatmul.mubr.f32.gmra.mrb[0].mxu0 %v233
    %v743 = vpop.f32.mrb[0].mxu0
    %v744 = vadd.f32 %v599, %v743
    %v745 = vpop.f32.mrb[0].mxu0
    %746 = vmatprep.mubr.f32.mxu0 0.0
    %747 = vmatmul.mubr.f32.gmra.mrb[0].mxu0 %v232
    %v748 = vpop.f32.mrb[0].mxu0
    %v749 = vadd.f32 %v604, %v748
    %v750 = vpop.f32.mrb[0].mxu0
    %751 = vmatprep.mubr.f32.mxu0 0.0
    %752 = vmatmul.mubr.f32.gmra.mrb[0].mxu0 %v231
    %v753 = vpop.f32.mrb[0].mxu0
    %v754 = vadd.f32 %v609, %v753
    %v755 = vpop.f32.mrb[0].mxu0
    %756 = vmatprep.mubr.f32.mxu0 0.0
    %757 = vmatmul.mubr.f32.gmra.mrb[0].mxu0 %v246
    %v758 = vpop.f32.mrb[0].mxu0
    %v759 = vadd.f32 %v614, %v758
    %v760 = vpop.f32.mrb[0].mxu0
    %761 = vdwg.mxu0
    %v762 = vld [vmem:[%s3] sm:$0x1]
    %v764 = vlaneseq
    %v765 = vshrl.u32 %v764, 7
    %v766 = vsub.s32 0, %v765
    %v767 = vrot.slane %v762, %v766
    %v769 = vadd.f32 %v684, %v767
    %v770 = vadd.f32 %v689, %v767
    %v771 = vadd.f32 %v694, %v767
    %v772 = vadd.f32 %v699, %v767
    %v773 = vadd.f32 %v704, %v767
    %v774 = vadd.f32 %v709, %v767
    %v775 = vadd.f32 %v714, %v767
    %v776 = vadd.f32 %v719, %v767
    %v777 = vadd.f32 %v724, %v767
    %v778 = vadd.f32 %v729, %v767
    %v779 = vadd.f32 %v734, %v767
    %v780 = vadd.f32 %v739, %v767
    %v781 = vadd.f32 %v744, %v767
    %v782 = vadd.f32 %v749, %v767
    %v783 = vadd.f32 %v754, %v767
    %v784 = vadd.f32 %v759, %v767
    %v785 = vmax.f32 %v769, 0.0
    %v786 = vmax.f32 %v770, 0.0
    %v787 = vmax.f32 %v771, 0.0
    %v788 = vmax.f32 %v772, 0.0
    %v789 = vmax.f32 %v773, 0.0
    %v790 = vmax.f32 %v774, 0.0
    %v791 = vmax.f32 %v775, 0.0
    %v792 = vmax.f32 %v776, 0.0
    %v793 = vmax.f32 %v777, 0.0
    %v794 = vmax.f32 %v778, 0.0
    %v795 = vmax.f32 %v779, 0.0
    %v796 = vmax.f32 %v780, 0.0
    %v797 = vmax.f32 %v781, 0.0
    %v798 = vmax.f32 %v782, 0.0
    %v799 = vmax.f32 %v783, 0.0
    %v800 = vmax.f32 %v784, 0.0
    %v801 = vld [vmem:[#allocation10] sm:$0xff]
    %v802 = vld [vmem:[#allocation10 + $0x8] sm:$0xff]
    %v803 = vmul.f32 %v785, %v801
    %v804 = vmul.f32 %v786, %v802
    %v805 = vmul.f32 %v787, %v801
    %v806 = vmul.f32 %v788, %v802
    %v807 = vmul.f32 %v789, %v801
    %v808 = vmul.f32 %v790, %v802
    %v809 = vmul.f32 %v791, %v801
    %v810 = vmul.f32 %v792, %v802
    %v811 = vmul.f32 %v793, %v801
    %v812 = vmul.f32 %v794, %v802
    %v813 = vmul.f32 %v795, %v801
    %v814 = vmul.f32 %v796, %v802
    %v815 = vmul.f32 %v797, %v801
    %v816 = vmul.f32 %v798, %v802
    %v817 = vmul.f32 %v799, %v801
    %v818 = vmul.f32 %v800, %v802
    %v819 = vmax.f32 %v803, %v804
    %v820 = vrot.slane %v819, 4
    %v821 = vmax.f32 %v819, %v820
    %v822 = vrot.slane %v821, 2
    %v823 = vmax.f32 %v821, %v822
    %v824 = vrot.slane %v823, 1
    %v825 = vmax.f32 %v823, %v824
    %v826 = vmax.f32 %v805, %v806
    %v827 = vrot.slane %v826, 4
    %v828 = vmax.f32 %v826, %v827
    %v829 = vrot.slane %v828, 2
    %v830 = vmax.f32 %v828, %v829
    %v831 = vrot.slane %v830, 1
    %v832 = vmax.f32 %v830, %v831
    %v833 = vmax.f32 %v807, %v808
    %v834 = vrot.slane %v833, 4
    %v835 = vmax.f32 %v833, %v834
    %v836 = vrot.slane %v835, 2
    %v837 = vmax.f32 %v835, %v836
    %v838 = vrot.slane %v837, 1
    %v839 = vmax.f32 %v837, %v838
    %v840 = vmax.f32 %v809, %v810
    %v841 = vrot.slane %v840, 4
    %v842 = vmax.f32 %v840, %v841
    %v843 = vrot.slane %v842, 2
    %v844 = vmax.f32 %v842, %v843
    %v845 = vrot.slane %v844, 1
    %v846 = vmax.f32 %v844, %v845
    %v847 = vmax.f32 %v811, %v812
    %v848 = vrot.slane %v847, 4
    %v849 = vmax.f32 %v847, %v848
    %v850 = vrot.slane %v849, 2
    %v851 = vmax.f32 %v849, %v850
    %v852 = vrot.slane %v851, 1
    %v853 = vmax.f32 %v851, %v852
    %v854 = vmax.f32 %v813, %v814
    %v855 = vrot.slane %v854, 4
    %v856 = vmax.f32 %v854, %v855
    %v857 = vrot.slane %v856, 2
    %v858 = vmax.f32 %v856, %v857
    %v859 = vrot.slane %v858, 1
    %v860 = vmax.f32 %v858, %v859
    %v861 = vmax.f32 %v815, %v816
    %v862 = vrot.slane %v861, 4
    %v863 = vmax.f32 %v861, %v862
    %v864 = vrot.slane %v863, 2
    %v865 = vmax.f32 %v863, %v864
    %v866 = vrot.slane %v865, 1
    %v867 = vmax.f32 %v865, %v866
    %v868 = vmax.f32 %v817, %v818
    %v869 = vrot.slane %v868, 4
    %v870 = vmax.f32 %v868, %v869
    %v871 = vrot.slane %v870, 2
    %v872 = vmax.f32 %v870, %v871
    %v873 = vrot.slane %v872, 1
    %v874 = vmax.f32 %v872, %v873
    %v875 = vld [vmem:[#allocation11] sm:$0xff]
    %v876 = vld [vmem:[#allocation11 + $0x8] sm:$0xff]
    %v877 = vld [vmem:[#allocation11 + $0x10] sm:$0xff]
    %v878 = vld [vmem:[#allocation11 + $0x18] sm:$0xff]
    %v879 = vld [vmem:[#allocation11 + $0x20] sm:$0xff]
    %v880 = vld [vmem:[#allocation11 + $0x28] sm:$0xff]
    %v881 = vld [vmem:[#allocation11 + $0x30] sm:$0xff]
    %v882 = vld [vmem:[#allocation11 + $0x38] sm:$0xff]
    %v883 = vld [vmem:[#allocation11 + $0x40] sm:$0xff]
    %v884 = vld [vmem:[#allocation11 + $0x48] sm:$0xff]
    %v885 = vld [vmem:[#allocation11 + $0x50] sm:$0xff]
    %v886 = vld [vmem:[#allocation11 + $0x58] sm:$0xff]
    %v887 = vld [vmem:[#allocation11 + $0x60] sm:$0xff]
    %v888 = vld [vmem:[#allocation11 + $0x68] sm:$0xff]
    %v889 = vld [vmem:[#allocation11 + $0x70] sm:$0xff]
    %v890 = vld [vmem:[#allocation11 + $0x78] sm:$0xff]
    %v891 = vld [vmem:[%s6] sm:$0x1]
    %v893 = vlaneseq
    %v894 = vshrl.u32 %v893, 7
    %v895 = vsub.s32 0, %v894
    %v896 = vrot.slane %v891, %v895
    %vm906 = vcmask 1041409
    %v907 = vsel %vm906, %v832, %v825
    %vm908 = vcmask 1042434
    %v909 = vsel %vm908, %v839, %v907
    %vm910 = vcmask 1043459
    %v911 = vsel %vm910, %v846, %v909
    %vm912 = vcmask 1044484
    %v913 = vsel %vm912, %v853, %v911
    %vm914 = vcmask 1045509
    %v915 = vsel %vm914, %v860, %v913
    %vm916 = vcmask 1046534
    %v917 = vsel %vm916, %v867, %v915
    %vm918 = vcmask 1047559
    %v919 = vsel %vm918, %v874, %v917
    %921 = vmatprep.subr.mxu0 0.0
    %922 = vmatpush1.msra.mxu0 %v875
    %923 = vmatprep.subr.mxu0 0.0
    %924 = vmatpush1.msra.mxu0 %v876
    %925 = vmatprep.subr.mxu0 0.0
    %926 = vmatpush1.msra.mxu0 %v877
    %927 = vmatprep.subr.mxu0 0.0
    %928 = vmatpush1.msra.mxu0 %v878
    %929 = vmatprep.subr.mxu0 0.0
    %930 = vmatpush1.msra.mxu0 %v879
    %931 = vmatprep.subr.mxu0 0.0
    %932 = vmatpush1.msra.mxu0 %v880
    %933 = vmatprep.subr.mxu0 0.0
    %934 = vmatpush1.msra.mxu0 %v881
    %935 = vmatprep.subr.mxu0 0.0
    %936 = vmatpush1.msra.mxu0 %v882
    %937 = vmatprep.subr.mxu0 0.0
    %938 = vmatpush1.msra.mxu0 %v883
    %939 = vmatprep.subr.mxu0 0.0
    %940 = vmatpush1.msra.mxu0 %v884
    %941 = vmatprep.subr.mxu0 0.0
    %942 = vmatpush1.msra.mxu0 %v885
    %943 = vmatprep.subr.mxu0 0.0
    %944 = vmatpush1.msra.mxu0 %v886
    %945 = vmatprep.subr.mxu0 0.0
    %946 = vmatpush1.msra.mxu0 %v887
    %947 = vmatprep.subr.mxu0 0.0
    %948 = vmatpush1.msra.mxu0 %v888
    %949 = vmatprep.subr.mxu0 0.0
    %950 = vmatpush1.msra.mxu0 %v889
    %951 = vmatprep.subr.mxu0 0.0
    %952 = vmatpush1.msra.mxu0 %v890
    %953 = vmatprep.subr.mxu0 0.0
    %954 = vmatpush1.msra.mxu0 0.0
    %955 = vmatprep.subr.mxu0 0.0
    %956 = vmatpush1.msra.mxu0 0.0
    %957 = vmatprep.subr.mxu0 0.0
    %958 = vmatpush1.msra.mxu0 0.0
    %959 = vmatprep.subr.mxu0 0.0
    %960 = vmatpush1.msra.mxu0 0.0
    %961 = vmatprep.subr.mxu0 0.0
    %962 = vmatpush1.msra.mxu0 0.0
    %963 = vmatprep.subr.mxu0 0.0
    %964 = vmatpush1.msra.mxu0 0.0
    %965 = vmatprep.subr.mxu0 0.0
    %966 = vmatpush1.msra.mxu0 0.0
    %967 = vmatprep.subr.mxu0 0.0
    %968 = vmatpush1.msra.mxu0 0.0
    %969 = vmatprep.subr.mxu0 0.0
    %970 = vmatpush1.msra.mxu0 0.0
    %971 = vmatprep.subr.mxu0 0.0
    %972 = vmatpush1.msra.mxu0 0.0
    %973 = vmatprep.subr.mxu0 0.0
    %974 = vmatpush1.msra.mxu0 0.0
    %975 = vmatprep.subr.mxu0 0.0
    %976 = vmatpush1.msra.mxu0 0.0
    %977 = vmatprep.subr.mxu0 0.0
    %978 = vmatpush1.msra.mxu0 0.0
    %979 = vmatprep.subr.mxu0 0.0
    %980 = vmatpush1.msra.mxu0 0.0
    %981 = vmatprep.subr.mxu0 0.0
    %982 = vmatpush1.msra.mxu0 0.0
    %983 = vmatprep.subr.mxu0 0.0
    %984 = vmatpush1.msra.mxu0 0.0
    %985 = vmatprep.mubr.f32.mxu0 0.0
    %986 = vmatmul.mubr.f32.gmra.mrb[0].mxu0 %v919
    %v987 = vpop.f32.mrb[0].mxu0
    %v988 = vadd.f32 %v896, %v987
    %v989 = vpop.f32.mrb[0].mxu0
    %990 = vdwg.mxu0
    %991 = vst [vmem:[#allocation13] sm:$0xff] %v988
    // Predicated region
    $region49: #{tpu_custom_call.1} parent=1 // pred_check
      _
    $region50: #{tpu_custom_call.1} parent=1 // pred_check_branch
      %993 = sbr.rel (0) target = $region52
    $region51: #{tpu_custom_call.1} parent=1 // pred_region
      %s995 = ssub.s32 128, 128
      %996 = vsyncadd [#allocation7], %s995
      %s998 = sshll.u32 [#allocation13], 4
      %s999 = int_to_ptr.vmem [resolvable:$true] %s998
      %1001 = dma.vmem_to_hbm [thread:$0]  %s999, 128, %s7, [#allocation7]
    $region52: #{tpu_custom_call.1} parent=1 // pred_fallthru
      _
    // Predicated region
    $region53: #{tpu_custom_call.1} parent=1 // pred_check
      _
    $region54: #{tpu_custom_call.1} parent=1 // pred_check_branch
      %1003 = sbr.rel (0) target = $region56
    $region55: #{tpu_custom_call.1} parent=1 // pred_region
      %1004 = dma.done [#allocation7], 128
    $region56: #{tpu_custom_call.1} parent=1 // pred_fallthru
      _
    %1005 = vsyncpa [#allocation6], 1
    %1006 = vsyncpa [#allocation9], 1
    %1007 = vsyncpa [#allocation12], 1
    %1008 = vsyncpa [#allocation7], 1

</llo_original>
